<compile_context>
chip_gen: v5e
topology: v5e:2x2
jax: 0.10.0
libtpu: 0.0.40
codegen_flags: <defaults>
</compile_context>

<pallas_src>
import jax
import jax.numpy as jnp
import numpy as np
from jax.experimental import pallas as pl
from jax.experimental.pallas import tpu as pltpu


def _round_up(x, m):
    return ((x + m - 1) // m) * m


# ---------------------------------------------------------------------------
# Pallas kernel: tiled matmul + bias (out = x @ w + b), K-accumulated in f32.
# ---------------------------------------------------------------------------
def _matmul_bias_kernel(x_ref, w_ref, b_ref, o_ref, acc_ref):
    k = pl.program_id(2)

    @pl.when(k == 0)
    def _():
        acc_ref[...] = jnp.zeros_like(acc_ref)

    acc_ref[...] += jnp.dot(x_ref[...], w_ref[...],
                            preferred_element_type=jnp.float32)

    @pl.when(k == pl.num_programs(2) - 1)
    def _():
        o_ref[...] = (acc_ref[...] + b_ref[...]).astype(o_ref.dtype)


def linear_pallas(x2d, w_kE, bias, *, mxu_dtype=jnp.bfloat16,
                  out_dtype=jnp.float32, block_m=None):
    """out = x2d @ w_kE + bias via a tiled Pallas TPU kernel.

    x2d: (M, K), w_kE: (K, E) (already transposed vs. torch Linear), bias: (E,).
    """
    M, K = x2d.shape
    K2, E = w_kE.shape
    assert K == K2, (K, K2)

    if mxu_dtype is not None:
        x2d = x2d.astype(mxu_dtype)
        w_kE = w_kE.astype(mxu_dtype)
    bias = bias.astype(jnp.float32)

    # --- alignment padding (zero contributions are exact) -------------------
    # E padded to a 256 multiple so the N tile always spans the full 256-wide
    # MXU on v6e/v7x (cheap: weight/bias side only).
    E_pad = _round_up(E, 256)
    # K: keep the whole reduction resident per tile when small enough (single
    # K step, no accumulator read-modify-write), else pick a large MXU-aligned
    # divisor; re-pad K to a 512 multiple as a last resort (never tk=128).
    K_pad = _round_up(K, 128)
    if K_pad <= 1024:
        tk = K_pad
    elif K_pad % 512 == 0:
        tk = 512
    elif K_pad % 384 == 0:
        tk = 384
    elif K_pad % 256 == 0:
        tk = 256
    else:
        tk = 512
        K_pad = _round_up(K, 512)
    # M: only pad to the 8-sublane multiple (<= 7 zero rows); ragged M vs. the
    # tile size is handled by Pallas masking the boundary output store.
    M_pad = _round_up(M, 8)

    if M_pad != M or K_pad != K:
        x2d = jnp.pad(x2d, ((0, M_pad - M), (0, K_pad - K)))
    if K_pad != K or E_pad != E:
        w_kE = jnp.pad(w_kE, ((0, K_pad - K), (0, E_pad - E)))
    if E_pad != E:
        bias = jnp.pad(bias, (0, E_pad - E))
    bias2d = bias.reshape(1, E_pad)

    # --- tile sizes: large, lane-dense, well under 32 MiB VMEM even in f32 ---
    tn = 512 if E_pad % 512 == 0 else 256
    tm = min(512, M_pad)
    # v7x has 2 TensorCores: if the N axis collapses to a single block, keep
    # at least 2 blocks along the (parallel) M axis so the second TC has work.
    if E_pad // tn == 1 and (M_pad + tm - 1) // tm < 2 and M_pad >= 256:
        tm = _round_up((M_pad + 1) // 2, 8)
    if block_m is not None:
        tm = block_m

    grid = (pl.cdiv(M_pad, tm), E_pad // tn, K_pad // tk)
    # NOTE: when M_pad % tm != 0 the boundary M block feeds undefined rows into
    # the MXU; Pallas masks the out-of-range rows of the output store, so this
    # is correct (explicitly exercised by the ragged-M test in __main__).
    # Do NOT alias the accumulator to the output without revisiting this.

    in_bytes = int(jnp.dtype(x2d.dtype).itemsize)
    cost = pl.CostEstimate(
        flops=2 * M_pad * K_pad * E_pad,
        transcendentals=0,
        bytes_accessed=(M_pad * K_pad + K_pad * E_pad) * in_bytes
        + M_pad * E_pad * int(jnp.dtype(out_dtype).itemsize),
    )

    out = pl.pallas_call(
        _matmul_bias_kernel,
        out_shape=jax.ShapeDtypeStruct((M_pad, E_pad), out_dtype),
        grid_spec=pltpu.PrefetchScalarGridSpec(
            num_scalar_prefetch=0,
            grid=grid,
            in_specs=[
                pl.BlockSpec((tm, tk), lambda i, j, k: (i, k)),
                pl.BlockSpec((tk, tn), lambda i, j, k: (k, j)),
                pl.BlockSpec((1, tn), lambda i, j, k: (0, j)),
            ],
            out_specs=pl.BlockSpec((tm, tn), lambda i, j, k: (i, j)),
            scratch_shapes=[pltpu.VMEM((tm, tn), jnp.float32)],
        ),
        compiler_params=pltpu.CompilerParams(
            dimension_semantics=("parallel", "parallel", "arbitrary"),
            vmem_limit_bytes=32 * 1024 * 1024,  # fits v7x's 64 MiB physical
            # Let XLA fuse the activation producer (patch-copy / bf16 cast)
            # into the kernel's input DMA when the forward is jit'd.
            allow_input_fusion=[True, False, False],
        ),
        cost_estimate=cost,
    )(x2d, w_kE, bias2d)

    if M_pad != M or E_pad != E:
        # TODO(synk): consumers that accept a 256-padded embedding dim can
        # skip this trailing slice (saves one full-output copy).
        out = out[:M, :E]
    return out


# ---------------------------------------------------------------------------
# Plain-JAX glue reproducing the PyTorch module's data plumbing exactly.
# ---------------------------------------------------------------------------
def _create_patches(x, patch_size):
    """Exactly reproduce ImagePatchCreatorProjector.create_patches (NCHW)."""
    B, C, H, W = x.shape
    P = patch_size
    nH, nW = H // P, W // P
    x = x[:, :, : nH * P, : nW * P]
    # unfold(2, P, P).unfold(3, P, P) -> (B, C, nH, nW, P, P)
    x = x.reshape(B, C, nH, P, nW, P).transpose(0, 1, 2, 4, 3, 5)
    # .contiguous().view(B, -1, P, P, C)   (raw row-major reshape, as in torch)
    x = x.reshape(B, -1, P, P, C)
    # .permute(0, 1, 4, 2, 3).contiguous().view(B, -1, P, P)
    x = jnp.transpose(x, (0, 1, 4, 2, 3)).reshape(B, -1, P, P)
    return x


def _adaptive_avg_matrix(in_size, out_size, dtype=jnp.float32):
    """Averaging matrix replicating torch AdaptiveAvgPool2d index semantics."""
    i = np.arange(out_size)
    start = np.floor(i * in_size / out_size).astype(np.int64)
    end = np.ceil((i + 1) * in_size / out_size).astype(np.int64)
    j = np.arange(in_size)
    mask = (j[None, :] >= start[:, None]) & (j[None, :] < end[:, None])
    counts = (end - start).astype(np.float64)
    return jnp.asarray(mask.astype(np.float64) / counts[:, None], dtype=dtype)


class ImagePatchCreatorProjectorPallas:
    """JAX/Pallas port of the PyTorch ImagePatchCreatorProjector module."""

    def __init__(self, max_patch_size, embedding_dim, key,
                 mxu_dtype=jnp.bfloat16):
        self.max_patch_size = max_patch_size
        self.embedding_dim = embedding_dim
        self._key = key
        self.mxu_dtype = mxu_dtype     # None -> exact f32 path
        self._param_cache = {}         # in_features -> (w_t, b)
        self._perm_w_cache = {}        # (C, P)      -> scramble-folded weight

    def init_projection(self, in_features):
        # torch re-creates nn.Linear (random init) every forward; here the
        # projection is drawn deterministically from the stored key with the
        # same kaiming-uniform-style bounds.  Weight is generated directly in
        # (K, E) layout so no transpose is ever materialized.
        kw, kb = jax.random.split(self._key)
        bound = 1.0 / float(np.sqrt(in_features))
        w_t = jax.random.uniform(kw, (in_features, self.embedding_dim),
                                 jnp.float32, -bound, bound)
        b = jax.random.uniform(kb, (self.embedding_dim,),
                               jnp.float32, -bound, bound)
        return w_t, b

    def _get_params(self, in_features):
        # Hoisted out of the per-forward path: regenerating K x E uniform
        # weights every call is pure overhead (kept deterministic per key).
        if in_features not in self._param_cache:
            self._param_cache[in_features] = self.init_projection(in_features)
        return self._param_cache[in_features]

    def _get_scrambled_weight(self, C, P):
        # Fold the torch "raw view + permute" column scramble of each sequence
        # row into a one-time row permutation of the (K, E) weight:
        #   feats_scrambled @ W  ==  feats_natural @ W_perm
        # feats_scrambled column j=(c,p,q)  <->  natural column i = p*P*C+q*C+c,
        # hence W_perm[p*P*C+q*C+c] = W[c*P*P+p*P+q].
        key = (C, P)
        if key not in self._perm_w_cache:
            w_t, _ = self._get_params(P * P * C)
            E = self.embedding_dim
            w_perm = (w_t.reshape(C, P, P, E)
                         .transpose(1, 2, 0, 3)
                         .reshape(P * P * C, E))
            self._perm_w_cache[key] = w_perm
        return self._perm_w_cache[key]

    def __call__(self, x):
        B, C, H, W = x.shape
        P = min(H, W, self.max_patch_size)              # dynamic patch size
        in_features = P * P * C
        w_t, b = self._get_params(in_features)

        if self.mxu_dtype is not None:
            # Cast early so the single activation copy (unfold transpose) is
            # written in bf16 -> half the HBM bytes of the glue.
            x = x.astype(self.mxu_dtype)

        if P == self.max_patch_size:
            # AdaptiveAvgPool2d((P, P)) on PxP patches is the identity: fold it
            # away, and fold the row scramble into the weight so only the
            # spatial unfold transpose touches the activations.
            nH, nW = H // P, W // P
            xc = x[:, :, : nH * P, : nW * P]
            x_unf = xc.reshape(B, C, nH, P, nW, P).transpose(0, 1, 2, 4, 3, 5)
            feats = x_unf.reshape(B, nH * nW, in_features)   # natural order
            w_use = self._get_scrambled_weight(C, P)
        else:
            # Small-image fallback (P < max_patch_size): exact torch plumbing
            # + separable adaptive average pool, then the plain weight.
            patches = _create_patches(x, P)
            A = _adaptive_avg_matrix(P, self.max_patch_size)
            pooled = jnp.einsum("op,bnpq,wq->bnow", A, patches, A)
            feats = pooled.reshape(B, -1, in_features)
            w_use = w_t

        seqlen = feats.shape[1]
        out2d = linear_pallas(feats.reshape(B * seqlen, in_features), w_use, b,
                              mxu_dtype=self.mxu_dtype)
        return out2d.reshape(B, seqlen, self.embedding_dim)


# ---------------------------------------------------------------------------
# Pure-JAX reference of the full forward (explicit pool, scrambled feats @ W).
# ---------------------------------------------------------------------------
def _reference_forward(module, x):
    B, C, H, W = x.shape
    P = min(H, W, module.max_patch_size)
    in_features = P * P * C
    w_t, b = module._get_params(in_features)
    patches = _create_patches(x, P)
    A = _adaptive_avg_matrix(P, module.max_patch_size)
    pooled = jnp.einsum("op,bnpq,wq->bnow", A, patches, A)
    return pooled.reshape(B, -1, in_features) @ w_t + b


if __name__ == "__main__":
    key = jax.random.PRNGKey(0)
    kx1, kx2, kx3, kw3, kb3, kp = jax.random.split(key, 6)

    max_patch_size, embedding_dim = 8, 32

    # --- exactness checks: f32 MXU path (mxu_dtype=None) --------------------
    mod_f32 = ImagePatchCreatorProjectorPallas(max_patch_size, embedding_dim,
                                               kp, mxu_dtype=None)

    # Case 1: H, W >= max_patch_size -> P == max_patch_size; pool folded away,
    # row scramble folded into the weight (fast path).
    B, C, H, W = 2, 4, 16, 16
    x1 = jax.random.normal(kx1, (B, C, H, W), dtype=jnp.float32)
    out1 = jax.block_until_ready(mod_f32(x1))
    ref1 = _reference_forward(mod_f32, x1)
    assert out1.shape == ref1.shape == (B, 4, embedding_dim)
    np.testing.assert_allclose(np.asarray(out1), np.asarray(ref1),
                               rtol=1e-5, atol=1e-5)

    # Case 2: small image (P < max_patch_size) -> einsum pooling fallback and
    # the kernel's K-padding path (K = 64 -> 128).
    x2 = jax.random.normal(kx2, (2, 4, 4, 4), dtype=jnp.float32)
    out2 = jax.block_until_ready(mod_f32(x2))
    ref2 = _reference_forward(mod_f32, x2)
    assert out2.shape == ref2.shape
    np.testing.assert_allclose(np.asarray(out2), np.asarray(ref2),
                               rtol=1e-5, atol=1e-5)

    # Case 3: default bf16 MXU inputs (v5e/v6e/v7x throughput path) with f32
    # accumulation -> compare against the f32 reference at bf16 tolerance.
    mod_bf16 = ImagePatchCreatorProjectorPallas(max_patch_size, embedding_dim,
                                                kp)  # default: bfloat16
    out1b = jax.block_until_ready(mod_bf16(x1))
    assert out1b.shape == ref1.shape
    np.testing.assert_allclose(np.asarray(out1b), np.asarray(ref1),
                               rtol=3e-2, atol=3e-2)

    # Case 4: ragged M (M % tm != 0, multiple M blocks): the boundary output
    # block is masked by Pallas, so the garbage rows fed to the MXU never
    # reach HBM.  Guards the masking assumption against future refactors.
    M, K, E = 40, 256, 32
    xr = jax.random.normal(kx3, (M, K), dtype=jnp.float32)
    wr = jax.random.uniform(kw3, (K, E), jnp.float32, -0.05, 0.05)
    br = jax.random.uniform(kb3, (E,), jnp.float32, -0.05, 0.05)
    outr = jax.block_until_ready(
        linear_pallas(xr, wr, br, mxu_dtype=None, block_m=16))
    refr = xr @ wr + br
    np.testing.assert_allclose(np.asarray(outr), np.asarray(refr),
                               rtol=1e-5, atol=1e-5)

    print("KERNEL_OK")
</pallas_src>

<mosaic_0001>
module attributes {stable_mosaic.version = 11 : i64} {
  func.func @_matmul_bias_kernel(%arg0: i32, %arg1: i32, %arg2: i32, %arg3: memref<8x256xf32, #tpu.memory_space<vmem>>, %arg4: memref<256x256xf32, #tpu.memory_space<vmem>>, %arg5: memref<1x256xf32, #tpu.memory_space<vmem>>, %arg6: memref<8x256xf32, #tpu.memory_space<vmem>>, %arg7: memref<8x256xf32, #tpu.memory_space<vmem>>) attributes {dimension_semantics = [#tpu.dimension_semantics<parallel>, #tpu.dimension_semantics<parallel>, #tpu.dimension_semantics<arbitrary>], iteration_bounds = array<i64: 1, 1, 1>, scalar_prefetch = 0 : i64, scratch_operands = 1 : i64, tpu.core_type = #tpu.core_type<tc>, window_params = [{transform_indices = @transform_0, window_bounds = array<i64: 8, 256>}, {transform_indices = @transform_1, window_bounds = array<i64: 256, 256>}, {transform_indices = @transform_2, window_bounds = array<i64: 1, 256>}, {transform_indices = @transform_3, window_bounds = array<i64: 8, 256>}]} {
    %c0_i32 = arith.constant 0 : i32
    %0 = arith.cmpi eq, %arg2, %c0_i32 : i32
    %1 = arith.extui %0 : i1 to i32
    %c0_i32_0 = arith.constant 0 : i32
    %2 = arith.cmpi ne, %1, %c0_i32_0 : i32
    scf.if %2 {
      %cst_10 = arith.constant 0.000000e+00 : f32
      %12 = vector.broadcast %cst_10 : f32 to vector<8x256xf32>
      %c0_11 = arith.constant 0 : index
      %c0_12 = arith.constant 0 : index
      %13 = vector.load %arg7[%c0_11, %c0_12] : memref<8x256xf32, #tpu.memory_space<vmem>>, vector<8x256xf32>
      tpu.vector_store %arg7[%c0_11, %c0_12], %12 {strides = array<i32>} : memref<8x256xf32, #tpu.memory_space<vmem>>, vector<8x256xf32>,
    } else {
    }
    %c0 = arith.constant 0 : index
    %c0_1 = arith.constant 0 : index
    %3 = vector.load %arg7[%c0, %c0_1] : memref<8x256xf32, #tpu.memory_space<vmem>>, vector<8x256xf32>
    %c0_2 = arith.constant 0 : index
    %c0_3 = arith.constant 0 : index
    %4 = vector.load %arg3[%c0_2, %c0_3] : memref<8x256xf32, #tpu.memory_space<vmem>>, vector<8x256xf32>
    %c0_4 = arith.constant 0 : index
    %c0_5 = arith.constant 0 : index
    %5 = vector.load %arg4[%c0_4, %c0_5] : memref<256x256xf32, #tpu.memory_space<vmem>>, vector<256x256xf32>
    %cst = arith.constant dense<0.000000e+00> : vector<8x256xf32>
    %6 = tpu.matmul %4, %5, %cst {dimension_numbers = #tpu.dot_dimension_numbers<[1], [0], [0], [1], [0, 0, 1, 1], [], []>} : vector<8x256xf32>, vector<256x256xf32>, vector<8x256xf32> -> vector<8x256xf32>
    %7 = arith.addf %3, %6 : vector<8x256xf32>
    %c0_6 = arith.constant 0 : index
    %c0_7 = arith.constant 0 : index
    %8 = vector.load %arg7[%c0_6, %c0_7] : memref<8x256xf32, #tpu.memory_space<vmem>>, vector<8x256xf32>
    tpu.vector_store %arg7[%c0_6, %c0_7], %7 {strides = array<i32>} : memref<8x256xf32, #tpu.memory_space<vmem>>, vector<8x256xf32>,
    %c0_i32_8 = arith.constant 0 : i32
    %9 = arith.cmpi eq, %arg2, %c0_i32_8 : i32
    %10 = arith.extui %9 : i1 to i32
    %c0_i32_9 = arith.constant 0 : i32
    %11 = arith.cmpi ne, %10, %c0_i32_9 : i32
    scf.if %11 {
      %c0_10 = arith.constant 0 : index
      %c0_11 = arith.constant 0 : index
      %12 = vector.load %arg7[%c0_10, %c0_11] : memref<8x256xf32, #tpu.memory_space<vmem>>, vector<8x256xf32>
      %c0_12 = arith.constant 0 : index
      %c0_13 = arith.constant 0 : index
      %13 = vector.load %arg5[%c0_12, %c0_13] : memref<1x256xf32, #tpu.memory_space<vmem>>, vector<1x256xf32>
      %14 = vector.broadcast %13 : vector<1x256xf32> to vector<8x256xf32>
      %15 = arith.addf %12, %14 : vector<8x256xf32>
      %c0_14 = arith.constant 0 : index
      %c0_15 = arith.constant 0 : index
      %16 = vector.load %arg6[%c0_14, %c0_15] : memref<8x256xf32, #tpu.memory_space<vmem>>, vector<8x256xf32>
      tpu.vector_store %arg6[%c0_14, %c0_15], %15 {strides = array<i32>} : memref<8x256xf32, #tpu.memory_space<vmem>>, vector<8x256xf32>,
    } else {
    }
    return
  }
  func.func @transform_0(%arg0: i32, %arg1: i32, %arg2: i32) -> (i32, i32) {
    %c0_i32 = arith.constant 0 : i32
    return %arg0, %arg2 : i32, i32
  }
  func.func @transform_1(%arg0: i32, %arg1: i32, %arg2: i32) -> (i32, i32) {
    %c0_i32 = arith.constant 0 : i32
    return %arg2, %arg1 : i32, i32
  }
  func.func @transform_2(%arg0: i32, %arg1: i32, %arg2: i32) -> (i32, i32) {
    %c0_i32 = arith.constant 0 : i32
    %c0_i32_0 = arith.constant 0 : i32
    return %c0_i32, %arg1 : i32, i32
  }
  func.func @transform_3(%arg0: i32, %arg1: i32, %arg2: i32) -> (i32, i32) {
    %c0_i32 = arith.constant 0 : i32
    return %arg0, %arg1 : i32, i32
  }
}

</mosaic_0001>

<llo_original>
// kernel: tpu_custom_call.1
$region0: #{tpu_custom_call.1}
  #allocation0 [shape = 'u32[]', space=smem, size = 0x4, offset = 0x4, fixed_abs, tag = 'smem constant byte address 0x4 - core index']
  #allocation1 [shape = 'u32[72,128]{1,0:T(1,128)}', space=vmem, size = 0x9000, scoped, tag = 'internal scratch']
  #allocation2 [shape = 'f32[8,256]{1,0:T(8,128)}', space=vmem, size = 0x2000, scoped, tag = 'scratch operand']
  %s0 = inlined_call_operand.hbm [shape: f32[8,256], index: 0, kind: input, shape index: {}]
  %s1 = inlined_call_operand.hbm [shape: f32[256,256], index: 1, kind: input, shape index: {}]
  %s2 = inlined_call_operand.hbm [shape: f32[1,256], index: 2, kind: input, shape index: {}]
  %s3 = inlined_call_operand.hbm [shape: f32[8,256], index: 3, kind: output, shape index: {}]
  %s4 = sld [smem:[#allocation0]]
  $region42: #{tpu_custom_call.1} parent=0
    _
  %s6 = ssub.s32 1, %s4
  %s7 = scalar_select 0, %s6, %s4
  $region1: #{tpu_custom_call.1} parent=0
    #allocation3 [shape = 'u8[8192]{0}', space=vmem, size = 0x2000, scoped, tag = 'input window, operand 0, single buffered']
    #allocation4 [shape = 's32[1]{0}', space=sflag, size = 0x4, scoped, tag = 'scoped memory for tpu_custom_call.1']
    #allocation5 [shape = 's32[1]{0}', space=sflag, size = 0x4, scoped, tag = 'scoped memory for tpu_custom_call.1']
    #allocation6 [shape = 'u8[262144]{0}', space=vmem, size = 0x40000, scoped, tag = 'input window, operand 1, single buffered']
    #allocation7 [shape = 's32[1]{0}', space=sflag, size = 0x4, scoped, tag = 'scoped memory for tpu_custom_call.1']
    #allocation8 [shape = 'u8[1024]{0}', space=vmem, size = 0x400, scoped, tag = 'input window, operand 2, single buffered']
    #allocation9 [shape = 'u8[8192]{0}', space=vmem, size = 0x2000, scoped, tag = 'output window, operand 0, single buffered']
    %8 = vsyncpa [#allocation4], 0
    %9 = vsyncpa [#allocation7], 0
    %10 = vsyncpa [#allocation5], 0
    // Predicated region
    $region2: #{tpu_custom_call.1} parent=1 // pred_check
      _
    $region3: #{tpu_custom_call.1} parent=1 // pred_check_branch
      %12 = sbr.rel (0) target = $region5
    $region4: #{tpu_custom_call.1} parent=1 // pred_region
      %14 = vsyncadd [#allocation4], 0
      %s16 = sshll.u32 %s0, 4
      %s17 = int_to_ptr.hbm [resolvable:$true] %s16
      %s18 = sshll.u32 [#allocation3], 4
      %s19 = int_to_ptr.vmem [resolvable:$true] %s18
      %21 = dma.hbm_to_vmem [thread:$0]  %s17, 256, %s19, [#allocation4]
    $region5: #{tpu_custom_call.1} parent=1 // pred_fallthru
      _
    // Predicated region
    $region6: #{tpu_custom_call.1} parent=1 // pred_check
      _
    $region7: #{tpu_custom_call.1} parent=1 // pred_check_branch
      %23 = sbr.rel (0) target = $region9
    $region8: #{tpu_custom_call.1} parent=1 // pred_region
      %25 = vsyncadd [#allocation7], 0
      %s26 = sshll.u32 %s1, 4
      %s27 = int_to_ptr.hbm [resolvable:$true] %s26
      %s28 = sshll.u32 [#allocation6], 4
      %s29 = int_to_ptr.vmem [resolvable:$true] %s28
      %34 = dma.hbm_to_vmem [thread:$0]  %s27, 8192, %s29, [#allocation7], 256, 256, 16
    $region9: #{tpu_custom_call.1} parent=1 // pred_fallthru
      _
    // Predicated region
    $region10: #{tpu_custom_call.1} parent=1 // pred_check
      _
    $region11: #{tpu_custom_call.1} parent=1 // pred_check_branch
      %36 = sbr.rel (0) target = $region13
    $region12: #{tpu_custom_call.1} parent=1 // pred_region
      %38 = vsyncadd [#allocation7], 0
      %s40 = sshll.u32 %s2, 4
      %s41 = int_to_ptr.hbm [resolvable:$true] %s40
      %s42 = sshll.u32 [#allocation8], 4
      %s43 = int_to_ptr.vmem [resolvable:$true] %s42
      %45 = dma.hbm_to_vmem [thread:$0]  %s41, 32, %s43, [#allocation7]
    $region13: #{tpu_custom_call.1} parent=1 // pred_fallthru
      _
    // Predicated region
    $region14: #{tpu_custom_call.1} parent=1 // pred_check
      _
    $region15: #{tpu_custom_call.1} parent=1 // pred_check_branch
      %47 = sbr.rel (0) target = $region17
    $region16: #{tpu_custom_call.1} parent=1 // pred_region
      %49 = dma.done [#allocation4], 256
    $region17: #{tpu_custom_call.1} parent=1 // pred_fallthru
      _
    // Predicated region
    $region18: #{tpu_custom_call.1} parent=1 // pred_check
      _
    $region19: #{tpu_custom_call.1} parent=1 // pred_check_branch
      %51 = sbr.rel (0) target = $region21
    $region20: #{tpu_custom_call.1} parent=1 // pred_region
      %53 = dma.done [#allocation7], 8192
    $region21: #{tpu_custom_call.1} parent=1 // pred_fallthru
      _
    // Predicated region
    $region22: #{tpu_custom_call.1} parent=1 // pred_check
      _
    $region23: #{tpu_custom_call.1} parent=1 // pred_check_branch
      %55 = sbr.rel (0) target = $region25
    $region24: #{tpu_custom_call.1} parent=1 // pred_region
      %57 = dma.done [#allocation7], 32
    $region25: #{tpu_custom_call.1} parent=1 // pred_fallthru
      _
    %p58 = scmp.eq.s32.totalorder 0, 0
    // Predicated region
    $region26: #{tpu_custom_call.1} parent=1 // pred_check
      %p59 = pneg %p58
    $region27: #{tpu_custom_call.1} parent=1 // pred_check_branch
      %61 = sbr.rel (%p59) target = $region29
    $region28: #{tpu_custom_call.1} parent=1 // pred_region
      %62 = vst [vmem:[#allocation2] sm:$0xff] 0.0
      %63 = vst [vmem:[#allocation2 + $0x8] sm:$0xff] 0.0
    $region29: #{tpu_custom_call.1} parent=1 // pred_fallthru
      _
    %v64 = vld [vmem:[#allocation2] sm:$0xff]
    %v65 = vld [vmem:[#allocation2 + $0x8] sm:$0xff]
    %v66 = vld [vmem:[#allocation3] sm:$0xff]
    %v67 = vld [vmem:[#allocation3 + $0x8] sm:$0xff]
    %v68 = vld [vmem:[#allocation6] sm:$0xff]
    %v69 = vld [vmem:[#allocation6 + $0x8] sm:$0xff]
    %v70 = vld [vmem:[#allocation6 + $0x10] sm:$0xff]
    %v71 = vld [vmem:[#allocation6 + $0x18] sm:$0xff]
    %v72 = vld [vmem:[#allocation6 + $0x20] sm:$0xff]
    %v73 = vld [vmem:[#allocation6 + $0x28] sm:$0xff]
    %v74 = vld [vmem:[#allocation6 + $0x30] sm:$0xff]
    %v75 = vld [vmem:[#allocation6 + $0x38] sm:$0xff]
    %v76 = vld [vmem:[#allocation6 + $0x40] sm:$0xff]
    %v77 = vld [vmem:[#allocation6 + $0x48] sm:$0xff]
    %v78 = vld [vmem:[#allocation6 + $0x50] sm:$0xff]
    %v79 = vld [vmem:[#allocation6 + $0x58] sm:$0xff]
    %v80 = vld [vmem:[#allocation6 + $0x60] sm:$0xff]
    %v81 = vld [vmem:[#allocation6 + $0x68] sm:$0xff]
    %v82 = vld [vmem:[#allocation6 + $0x70] sm:$0xff]
    %v83 = vld [vmem:[#allocation6 + $0x78] sm:$0xff]
    %v84 = vld [vmem:[#allocation6 + $0x80] sm:$0xff]
    %v85 = vld [vmem:[#allocation6 + $0x88] sm:$0xff]
    %v86 = vld [vmem:[#allocation6 + $0x90] sm:$0xff]
    %v87 = vld [vmem:[#allocation6 + $0x98] sm:$0xff]
    %v88 = vld [vmem:[#allocation6 + $0xa0] sm:$0xff]
    %v89 = vld [vmem:[#allocation6 + $0xa8] sm:$0xff]
    %v90 = vld [vmem:[#allocation6 + $0xb0] sm:$0xff]
    %v91 = vld [vmem:[#allocation6 + $0xb8] sm:$0xff]
    %v92 = vld [vmem:[#allocation6 + $0xc0] sm:$0xff]
    %v93 = vld [vmem:[#allocation6 + $0xc8] sm:$0xff]
    %v94 = vld [vmem:[#allocation6 + $0xd0] sm:$0xff]
    %v95 = vld [vmem:[#allocation6 + $0xd8] sm:$0xff]
    %v96 = vld [vmem:[#allocation6 + $0xe0] sm:$0xff]
    %v97 = vld [vmem:[#allocation6 + $0xe8] sm:$0xff]
    %v98 = vld [vmem:[#allocation6 + $0xf0] sm:$0xff]
    %v99 = vld [vmem:[#allocation6 + $0xf8] sm:$0xff]
    %v100 = vld [vmem:[#allocation6 + $0x100] sm:$0xff]
    %v101 = vld [vmem:[#allocation6 + $0x108] sm:$0xff]
    %v102 = vld [vmem:[#allocation6 + $0x110] sm:$0xff]
    %v103 = vld [vmem:[#allocation6 + $0x118] sm:$0xff]
    %v104 = vld [vmem:[#allocation6 + $0x120] sm:$0xff]
    %v105 = vld [vmem:[#allocation6 + $0x128] sm:$0xff]
    %v106 = vld [vmem:[#allocation6 + $0x130] sm:$0xff]
    %v107 = vld [vmem:[#allocation6 + $0x138] sm:$0xff]
    %v108 = vld [vmem:[#allocation6 + $0x140] sm:$0xff]
    %v109 = vld [vmem:[#allocation6 + $0x148] sm:$0xff]
    %v110 = vld [vmem:[#allocation6 + $0x150] sm:$0xff]
    %v111 = vld [vmem:[#allocation6 + $0x158] sm:$0xff]
    %v112 = vld [vmem:[#allocation6 + $0x160] sm:$0xff]
    %v113 = vld [vmem:[#allocation6 + $0x168] sm:$0xff]
    %v114 = vld [vmem:[#allocation6 + $0x170] sm:$0xff]
    %v115 = vld [vmem:[#allocation6 + $0x178] sm:$0xff]
    %v116 = vld [vmem:[#allocation6 + $0x180] sm:$0xff]
    %v117 = vld [vmem:[#allocation6 + $0x188] sm:$0xff]
    %v118 = vld [vmem:[#allocation6 + $0x190] sm:$0xff]
    %v119 = vld [vmem:[#allocation6 + $0x198] sm:$0xff]
    %v120 = vld [vmem:[#allocation6 + $0x1a0] sm:$0xff]
    %v121 = vld [vmem:[#allocation6 + $0x1a8] sm:$0xff]
    %v122 = vld [vmem:[#allocation6 + $0x1b0] sm:$0xff]
    %v123 = vld [vmem:[#allocation6 + $0x1b8] sm:$0xff]
    %v124 = vld [vmem:[#allocation6 + $0x1c0] sm:$0xff]
    %v125 = vld [vmem:[#allocation6 + $0x1c8] sm:$0xff]
    %v126 = vld [vmem:[#allocation6 + $0x1d0] sm:$0xff]
    %v127 = vld [vmem:[#allocation6 + $0x1d8] sm:$0xff]
    %v128 = vld [vmem:[#allocation6 + $0x1e0] sm:$0xff]
    %v129 = vld [vmem:[#allocation6 + $0x1e8] sm:$0xff]
    %v130 = vld [vmem:[#allocation6 + $0x1f0] sm:$0xff]
    %v131 = vld [vmem:[#allocation6 + $0x1f8] sm:$0xff]
    %132 = vmatpush.msra.mxu0 %v98
    %133 = vmatpush.msra.mxu0 %v96
    %134 = vmatpush.msra.mxu0 %v94
    %135 = vmatpush.msra.mxu0 %v92
    %136 = vmatpush.msra.mxu0 %v90
    %137 = vmatpush.msra.mxu0 %v88
    %138 = vmatpush.msra.mxu0 %v86
    %139 = vmatpush.msra.mxu0 %v84
    %140 = vmatpush.msra.mxu0 %v82
    %141 = vmatpush.msra.mxu0 %v80
    %142 = vmatpush.msra.mxu0 %v78
    %143 = vmatpush.msra.mxu0 %v76
    %144 = vmatpush.msra.mxu0 %v74
    %145 = vmatpush.msra.mxu0 %v72
    %146 = vmatpush.msra.mxu0 %v70
    %147 = vmatpush.msra.mxu0 %v68
    %148 = vmatmul.f32.gmra.mxu0 %v66
    %v149 = vpop.f32.mrf.mxu0
    %v150 = vadd.f32 0.0, %v149
    %151 = vdwg.mxu0
    %152 = vmatpush.msra.mxu0 %v130
    %153 = vmatpush.msra.mxu0 %v128
    %154 = vmatpush.msra.mxu0 %v126
    %155 = vmatpush.msra.mxu0 %v124
    %156 = vmatpush.msra.mxu0 %v122
    %157 = vmatpush.msra.mxu0 %v120
    %158 = vmatpush.msra.mxu0 %v118
    %159 = vmatpush.msra.mxu0 %v116
    %160 = vmatpush.msra.mxu0 %v114
    %161 = vmatpush.msra.mxu0 %v112
    %162 = vmatpush.msra.mxu0 %v110
    %163 = vmatpush.msra.mxu0 %v108
    %164 = vmatpush.msra.mxu0 %v106
    %165 = vmatpush.msra.mxu0 %v104
    %166 = vmatpush.msra.mxu0 %v102
    %167 = vmatpush.msra.mxu0 %v100
    %168 = vmatmul.f32.gmra.mxu0 %v67
    %v169 = vpop.f32.mrf.mxu0
    %v170 = vadd.f32 %v150, %v169
    %171 = vdwg.mxu0
    %172 = vmatpush.msra.mxu0 %v99
    %173 = vmatpush.msra.mxu0 %v97
    %174 = vmatpush.msra.mxu0 %v95
    %175 = vmatpush.msra.mxu0 %v93
    %176 = vmatpush.msra.mxu0 %v91
    %177 = vmatpush.msra.mxu0 %v89
    %178 = vmatpush.msra.mxu0 %v87
    %179 = vmatpush.msra.mxu0 %v85
    %180 = vmatpush.msra.mxu0 %v83
    %181 = vmatpush.msra.mxu0 %v81
    %182 = vmatpush.msra.mxu0 %v79
    %183 = vmatpush.msra.mxu0 %v77
    %184 = vmatpush.msra.mxu0 %v75
    %185 = vmatpush.msra.mxu0 %v73
    %186 = vmatpush.msra.mxu0 %v71
    %187 = vmatpush.msra.mxu0 %v69
    %188 = vmatmul.f32.gmra.mxu0 %v66
    %v189 = vpop.f32.mrf.mxu0
    %v190 = vadd.f32 0.0, %v189
    %191 = vdwg.mxu0
    %192 = vmatpush.msra.mxu0 %v131
    %193 = vmatpush.msra.mxu0 %v129
    %194 = vmatpush.msra.mxu0 %v127
    %195 = vmatpush.msra.mxu0 %v125
    %196 = vmatpush.msra.mxu0 %v123
    %197 = vmatpush.msra.mxu0 %v121
    %198 = vmatpush.msra.mxu0 %v119
    %199 = vmatpush.msra.mxu0 %v117
    %200 = vmatpush.msra.mxu0 %v115
    %201 = vmatpush.msra.mxu0 %v113
    %202 = vmatpush.msra.mxu0 %v111
    %203 = vmatpush.msra.mxu0 %v109
    %204 = vmatpush.msra.mxu0 %v107
    %205 = vmatpush.msra.mxu0 %v105
    %206 = vmatpush.msra.mxu0 %v103
    %207 = vmatpush.msra.mxu0 %v101
    %208 = vmatmul.f32.gmra.mxu0 %v67
    %v209 = vpop.f32.mrf.mxu0
    %v210 = vadd.f32 %v190, %v209
    %211 = vdwg.mxu0
    %v212 = vadd.f32 %v64, %v170
    %v213 = vadd.f32 %v65, %v210
    %214 = vst [vmem:[#allocation2] sm:$0xff] %v212
    %215 = vst [vmem:[#allocation2 + $0x8] sm:$0xff] %v213
    // Predicated region
    $region30: #{tpu_custom_call.1} parent=1 // pred_check
      %p216 = pneg %p58
    $region31: #{tpu_custom_call.1} parent=1 // pred_check_branch
      %218 = sbr.rel (%p216) target = $region33
    $region32: #{tpu_custom_call.1} parent=1 // pred_region
      %v219 = vld [vmem:[#allocation2] sm:$0xff]
      %v220 = vld [vmem:[#allocation2 + $0x8] sm:$0xff]
      %v221 = vld [vmem:[#allocation8] sm:$0x3]
      %v223 = vperm.slane %v221, 0
      %v224 = vperm.slane %v221, 1
      %v227 = vadd.f32 %v219, %v223
      %v228 = vadd.f32 %v220, %v224
      %229 = vst [vmem:[#allocation9] sm:$0xff] %v227
      %230 = vst [vmem:[#allocation9 + $0x8] sm:$0xff] %v228
    $region33: #{tpu_custom_call.1} parent=1 // pred_fallthru
      _
    // Predicated region
    $region34: #{tpu_custom_call.1} parent=1 // pred_check
      _
    $region35: #{tpu_custom_call.1} parent=1 // pred_check_branch
      %232 = sbr.rel (0) target = $region37
    $region36: #{tpu_custom_call.1} parent=1 // pred_region
      %234 = vsyncadd [#allocation5], 0
      %s236 = sshll.u32 [#allocation9], 4
      %s237 = int_to_ptr.vmem [resolvable:$true] %s236
      %s238 = sshll.u32 %s3, 4
      %s239 = int_to_ptr.hbm [resolvable:$true] %s238
      %241 = dma.vmem_to_hbm [thread:$0]  %s237, 256, %s239, [#allocation5]
    $region37: #{tpu_custom_call.1} parent=1 // pred_fallthru
      _
    // Predicated region
    $region38: #{tpu_custom_call.1} parent=1 // pred_check
      _
    $region39: #{tpu_custom_call.1} parent=1 // pred_check_branch
      %243 = sbr.rel (0) target = $region41
    $region40: #{tpu_custom_call.1} parent=1 // pred_region
      %245 = dma.done [#allocation5], 256
    $region41: #{tpu_custom_call.1} parent=1 // pred_fallthru
      _
    %246 = vsyncpa [#allocation4], 1
    %247 = vsyncpa [#allocation7], 1
    %248 = vsyncpa [#allocation5], 1

</llo_original>
